<compile_context>
chip_gen: v7x
topology: tpu7x:2x2x1
jax: 0.10.0
libtpu: 0.0.40
codegen_flags: <defaults>
</compile_context>

<pallas_src>
import jax
import jax.numpy as jnp
from jax.experimental import pallas as pl
from jax.experimental.pallas import tpu as pltpu

EPS = 1e-6
_INV_SQRT2 = 0.7071067811865476


def mlp_kernel(x_ref, w1_ref, b1_ref, w2_ref, b2_ref, o_ref):
    # x_ref: (1, C, T) tile -- channels on sublanes, spatial on lanes.
    x = x_ref[0].astype(jnp.float32)                       # (C, T)
    c = x.shape[0]

    # LayerNorm over channels (channels_first semantics: biased var, eps in sqrt).
    # Single-pass E[x], E[x^2] + rsqrt (EUP slot) instead of two passes + divide.
    inv_c = 1.0 / c
    u = jnp.sum(x, axis=0, keepdims=True) * inv_c          # (1, T)
    m2 = jnp.sum(x * x, axis=0, keepdims=True) * inv_c     # (1, T)
    var = jnp.maximum(m2 - u * u, 0.0)
    xn = (x - u) * jax.lax.rsqrt(var + EPS)                # gamma/beta folded into w1/b1

    # fc1 (C -> 2C) + exact GELU + fc2 (2C -> C). bf16 operands, f32 accumulate.
    h = jnp.dot(w1_ref[...], xn.astype(jnp.bfloat16),
                preferred_element_type=jnp.float32) + b1_ref[...]   # (2C, T)
    h = 0.5 * h * (1.0 + jax.lax.erf(h * _INV_SQRT2))
    y = jnp.dot(w2_ref[...], h.astype(jnp.bfloat16),
                preferred_element_type=jnp.float32) + b2_ref[...]   # (C, T); scale folded in

    # residual add with the original (pre-norm) x, in f32.
    o_ref[0] = (y + x).astype(o_ref.dtype)


def mlp_forward(x_nchw, folded_params, *, tile_hw=1024):
    """x_nchw: (B, C, H, W) float32. folded_params from fold_params(). Returns (B, C, H, W)."""
    B, C, H, W = x_nchw.shape
    w1, b1, w2, b2 = folded_params
    C2 = w1.shape[0]
    HW = H * W

    # Lane-dense spatial tile: multiple of 128, no larger than HW rounded up to 128.
    t = min(int(tile_hw), ((HW + 127) // 128) * 128)
    t = max(128, (t // 128) * 128)

    # Free reshape (contiguous); no NCHW<->NHWC transpose passes.
    x3 = x_nchw.reshape(B, C, HW)
    pad = (-HW) % t
    if pad:
        x3 = jnp.pad(x3, ((0, 0), (0, 0), (0, pad)))
    HWp = HW + pad

    # VMEM budget: double-buffered x+out tiles (f32), h intermediate (f32),
    # double-buffered bf16 weights + biases. Clamp so v7x's 64 MiB is respected.
    need = (2 * 2 * C * t * 4) + 2 * (C2 * t * 4) + 2 * 2 * (2 * C2 * C * 2) + 4 * (C2 + C) * 4
    vmem_limit = int(min(max(2 * need, 32 * 1024 * 1024), 56 * 1024 * 1024))

    out = pl.pallas_call(
        mlp_kernel,
        out_shape=jax.ShapeDtypeStruct((B, C, HWp), x_nchw.dtype),
        grid_spec=pltpu.PrefetchScalarGridSpec(
            num_scalar_prefetch=0,
            grid=(B, HWp // t),
            in_specs=[
                pl.BlockSpec((1, C, t), lambda b, j: (b, 0, j)),  # x tile
                pl.BlockSpec((C2, C), lambda b, j: (0, 0)),       # w1 (gamma folded)
                pl.BlockSpec((C2, 1), lambda b, j: (0, 0)),       # b1 (+ w1@beta)
                pl.BlockSpec((C, C2), lambda b, j: (0, 0)),       # w2 (scale folded)
                pl.BlockSpec((C, 1), lambda b, j: (0, 0)),        # b2 (* scale)
            ],
            out_specs=pl.BlockSpec((1, C, t), lambda b, j: (b, 0, j)),
        ),
        compiler_params=pltpu.CompilerParams(
            dimension_semantics=("parallel", "parallel"),
            vmem_limit_bytes=vmem_limit),
    )(x3, w1, b1, w2, b2)

    return out[:, :, :HW].reshape(B, C, H, W)


def init_params(key, n_feats):
    """Raw module parameters. Conv weights in PyTorch (out, in) layout.
    gamma/beta: LayerNorm weight/bias (n_feats,); scale: (n_feats,)."""
    i_feats = 2 * n_feats
    k1, k2, k3, k4, k5, k6, k7 = jax.random.split(key, 7)
    gamma = 1.0 + 0.1 * jax.random.normal(k1, (n_feats,), jnp.float32)
    beta = 0.05 * jax.random.normal(k2, (n_feats,), jnp.float32)
    w1 = 0.1 * jax.random.normal(k3, (i_feats, n_feats), jnp.float32)
    b1 = 0.01 * jax.random.normal(k4, (i_feats,), jnp.float32)
    w2 = 0.1 * jax.random.normal(k5, (n_feats, i_feats), jnp.float32)
    b2 = 0.01 * jax.random.normal(k6, (n_feats,), jnp.float32)
    # Module __init__ sets scale to zeros; use small random values here so the
    # full compute path contributes to the output (still deterministic).
    scale = 0.1 * jax.random.normal(k7, (n_feats,), jnp.float32)
    return gamma, beta, w1, b1, w2, b2, scale


def fold_params(params, *, matmul_dtype=jnp.bfloat16):
    """One-time algebraic fold:
      fc1(gamma*xn + beta) = (w1*gamma) @ xn + (b1 + w1@beta)
      scale * (fc2(h))     = (scale*w2) @ h  + scale*b2
    Weights stored bf16 for MXU / HBM-byte savings; biases stay f32."""
    gamma, beta, w1, b1, w2, b2, scale = params
    w1f = w1 * gamma[None, :]
    b1f = b1 + w1 @ beta
    w2f = w2 * scale[:, None]
    b2f = b2 * scale
    return (w1f.astype(matmul_dtype), b1f[:, None].astype(jnp.float32),
            w2f.astype(matmul_dtype), b2f[:, None].astype(jnp.float32))


def mlp_reference(x, params):
    """Pure-JAX f32 reference of the PyTorch forward (NCHW, unfolded params)."""
    gamma, beta, w1, b1, w2, b2, scale = params
    u = jnp.mean(x, axis=1, keepdims=True)
    s = jnp.mean((x - u) ** 2, axis=1, keepdims=True)
    xn = (x - u) / jnp.sqrt(s + EPS)
    xn = gamma[None, :, None, None] * xn + beta[None, :, None, None]
    h = jnp.einsum('oc,bchw->bohw', w1, xn) + b1[None, :, None, None]
    h = 0.5 * h * (1.0 + jax.lax.erf(h / jnp.sqrt(2.0)))
    y = jnp.einsum('oc,bchw->bohw', w2, h) + b2[None, :, None, None]
    return y * scale[None, :, None, None] + x


if __name__ == "__main__":
    key = jax.random.PRNGKey(0)
    kx, kp = jax.random.split(key)
    B, C, H, W = 2, 4, 16, 16
    x = jax.random.normal(kx, (B, C, H, W), jnp.float32)
    params = init_params(kp, C)
    folded = fold_params(params)

    # tile_hw=128 exercises a multi-step (B, HW/t) grid at this small shape;
    # production default is 1024 (sweep 512-2048 per generation / VMEM budget).
    out = jax.block_until_ready(mlp_forward(x, folded, tile_hw=128))

    ref = mlp_reference(x, params)
    assert out.shape == (B, C, H, W)
    max_err = float(jnp.max(jnp.abs(out - ref)))
    # bf16 matmul operands (f32 accumulate) vs a pure-f32 reference.
    assert jnp.allclose(out, ref, atol=3e-3, rtol=3e-3), max_err
    print("KERNEL_OK")
</pallas_src>

<mosaic_0001>
module attributes {stable_mosaic.version = 11 : i64} {
  func.func @mlp_kernel(%arg0: i32, %arg1: i32, %arg2: memref<1x4x128xf32, #tpu.memory_space<vmem>>, %arg3: memref<8x4xbf16, #tpu.memory_space<vmem>>, %arg4: memref<8x1xf32, #tpu.memory_space<vmem>>, %arg5: memref<4x8xbf16, #tpu.memory_space<vmem>>, %arg6: memref<4x1xf32, #tpu.memory_space<vmem>>, %arg7: memref<1x4x128xf32, #tpu.memory_space<vmem>>) attributes {dimension_semantics = [#tpu.dimension_semantics<parallel>, #tpu.dimension_semantics<parallel>], iteration_bounds = array<i64: 2, 2>, scalar_prefetch = 0 : i64, scratch_operands = 0 : i64, tpu.core_type = #tpu.core_type<tc>, window_params = [{transform_indices = @transform_0, window_bounds = array<i64: 1, 4, 128>}, {pipeline_mode = #tpu.pipeline_mode<synchronous>, transform_indices = @transform_1, window_bounds = array<i64: 8, 4>}, {pipeline_mode = #tpu.pipeline_mode<synchronous>, transform_indices = @transform_2, window_bounds = array<i64: 8, 1>}, {pipeline_mode = #tpu.pipeline_mode<synchronous>, transform_indices = @transform_3, window_bounds = array<i64: 4, 8>}, {pipeline_mode = #tpu.pipeline_mode<synchronous>, transform_indices = @transform_4, window_bounds = array<i64: 4, 1>}, {transform_indices = @transform_5, window_bounds = array<i64: 1, 4, 128>}]} {
    %c0 = arith.constant 0 : index
    %c0_0 = arith.constant 0 : index
    %c0_1 = arith.constant 0 : index
    %0 = vector.load %arg2[%c0, %c0_0, %c0_1] : memref<1x4x128xf32, #tpu.memory_space<vmem>>, vector<1x4x128xf32>
    %1 = vector.shape_cast %0 : vector<1x4x128xf32> to vector<4x128xf32>
    %cst = arith.constant dense<0.000000e+00> : vector<128xf32>
    %2 = vector.multi_reduction <add>, %1, %cst [0] : vector<4x128xf32> to vector<128xf32>
    %3 = vector.shape_cast %2 : vector<128xf32> to vector<1x128xf32>
    %cst_2 = arith.constant 2.500000e-01 : f32
    %4 = vector.broadcast %cst_2 : f32 to vector<1x128xf32>
    %5 = arith.mulf %3, %4 : vector<1x128xf32>
    %6 = arith.mulf %1, %1 : vector<4x128xf32>
    %cst_3 = arith.constant dense<0.000000e+00> : vector<128xf32>
    %7 = vector.multi_reduction <add>, %6, %cst_3 [0] : vector<4x128xf32> to vector<128xf32>
    %8 = vector.shape_cast %7 : vector<128xf32> to vector<1x128xf32>
    %cst_4 = arith.constant 2.500000e-01 : f32
    %9 = vector.broadcast %cst_4 : f32 to vector<1x128xf32>
    %10 = arith.mulf %8, %9 : vector<1x128xf32>
    %11 = arith.mulf %5, %5 : vector<1x128xf32>
    %12 = arith.subf %10, %11 : vector<1x128xf32>
    %cst_5 = arith.constant 0.000000e+00 : f32
    %13 = vector.broadcast %cst_5 : f32 to vector<1x128xf32>
    %14 = arith.maximumf %12, %13 : vector<1x128xf32>
    %15 = vector.broadcast %5 : vector<1x128xf32> to vector<4x128xf32>
    %16 = arith.subf %1, %15 : vector<4x128xf32>
    %cst_6 = arith.constant 9.99999997E-7 : f32
    %17 = vector.broadcast %cst_6 : f32 to vector<1x128xf32>
    %18 = arith.addf %14, %17 : vector<1x128xf32>
    %19 = math.rsqrt %18 : vector<1x128xf32>
    %20 = vector.broadcast %19 : vector<1x128xf32> to vector<4x128xf32>
    %21 = arith.mulf %16, %20 : vector<4x128xf32>
    %c0_7 = arith.constant 0 : index
    %c0_8 = arith.constant 0 : index
    %22 = vector.load %arg3[%c0_7, %c0_8] : memref<8x4xbf16, #tpu.memory_space<vmem>>, vector<8x4xbf16>
    %23 = arith.truncf %21 : vector<4x128xf32> to vector<4x128xbf16>
    %cst_9 = arith.constant dense<0.000000e+00> : vector<8x128xf32>
    %24 = tpu.matmul %22, %23, %cst_9 {dimension_numbers = #tpu.dot_dimension_numbers<[1], [0], [0], [1], [0, 0, 1, 1], [], []>} : vector<8x4xbf16>, vector<4x128xbf16>, vector<8x128xf32> -> vector<8x128xf32>
    %c0_10 = arith.constant 0 : index
    %c0_11 = arith.constant 0 : index
    %25 = vector.load %arg4[%c0_10, %c0_11] : memref<8x1xf32, #tpu.memory_space<vmem>>, vector<8x1xf32>
    %26 = vector.broadcast %25 : vector<8x1xf32> to vector<8x128xf32>
    %27 = arith.addf %24, %26 : vector<8x128xf32>
    %cst_12 = arith.constant 5.000000e-01 : f32
    %28 = vector.broadcast %cst_12 : f32 to vector<8x128xf32>
    %29 = arith.mulf %28, %27 : vector<8x128xf32>
    %cst_13 = arith.constant 0.707106769 : f32
    %30 = vector.broadcast %cst_13 : f32 to vector<8x128xf32>
    %31 = arith.mulf %27, %30 : vector<8x128xf32>
    %32 = math.erf %31 : vector<8x128xf32>
    %cst_14 = arith.constant 1.000000e+00 : f32
    %33 = vector.broadcast %cst_14 : f32 to vector<8x128xf32>
    %34 = arith.addf %33, %32 : vector<8x128xf32>
    %35 = arith.mulf %29, %34 : vector<8x128xf32>
    %c0_15 = arith.constant 0 : index
    %c0_16 = arith.constant 0 : index
    %36 = vector.load %arg5[%c0_15, %c0_16] : memref<4x8xbf16, #tpu.memory_space<vmem>>, vector<4x8xbf16>
    %37 = arith.truncf %35 : vector<8x128xf32> to vector<8x128xbf16>
    %cst_17 = arith.constant dense<0.000000e+00> : vector<4x128xf32>
    %38 = tpu.matmul %36, %37, %cst_17 {dimension_numbers = #tpu.dot_dimension_numbers<[1], [0], [0], [1], [0, 0, 1, 1], [], []>} : vector<4x8xbf16>, vector<8x128xbf16>, vector<4x128xf32> -> vector<4x128xf32>
    %c0_18 = arith.constant 0 : index
    %c0_19 = arith.constant 0 : index
    %39 = vector.load %arg6[%c0_18, %c0_19] : memref<4x1xf32, #tpu.memory_space<vmem>>, vector<4x1xf32>
    %40 = vector.broadcast %39 : vector<4x1xf32> to vector<4x128xf32>
    %41 = arith.addf %38, %40 : vector<4x128xf32>
    %42 = arith.addf %41, %1 : vector<4x128xf32>
    %c0_20 = arith.constant 0 : index
    %c0_21 = arith.constant 0 : index
    %c0_22 = arith.constant 0 : index
    %43 = vector.load %arg7[%c0_20, %c0_21, %c0_22] : memref<1x4x128xf32, #tpu.memory_space<vmem>>, vector<1x4x128xf32>
    %44 = vector.shape_cast %43 : vector<1x4x128xf32> to vector<4x128xf32>
    %45 = vector.shape_cast %42 : vector<4x128xf32> to vector<1x4x128xf32>
    tpu.vector_store %arg7[%c0_20, %c0_21, %c0_22], %45 {strides = array<i32>} : memref<1x4x128xf32, #tpu.memory_space<vmem>>, vector<1x4x128xf32>,
    return
  }
  func.func @transform_0(%arg0: i32, %arg1: i32) -> (i32, i32, i32) {
    %c0_i32 = arith.constant 0 : i32
    %c0_i32_0 = arith.constant 0 : i32
    return %arg0, %c0_i32, %arg1 : i32, i32, i32
  }
  func.func @transform_1(%arg0: i32, %arg1: i32) -> (i32, i32) {
    %c0_i32 = arith.constant 0 : i32
    %c0_i32_0 = arith.constant 0 : i32
    %c0_i32_1 = arith.constant 0 : i32
    return %c0_i32, %c0_i32_0 : i32, i32
  }
  func.func @transform_2(%arg0: i32, %arg1: i32) -> (i32, i32) {
    %c0_i32 = arith.constant 0 : i32
    %c0_i32_0 = arith.constant 0 : i32
    %c0_i32_1 = arith.constant 0 : i32
    return %c0_i32, %c0_i32_0 : i32, i32
  }
  func.func @transform_3(%arg0: i32, %arg1: i32) -> (i32, i32) {
    %c0_i32 = arith.constant 0 : i32
    %c0_i32_0 = arith.constant 0 : i32
    %c0_i32_1 = arith.constant 0 : i32
    return %c0_i32, %c0_i32_0 : i32, i32
  }
  func.func @transform_4(%arg0: i32, %arg1: i32) -> (i32, i32) {
    %c0_i32 = arith.constant 0 : i32
    %c0_i32_0 = arith.constant 0 : i32
    %c0_i32_1 = arith.constant 0 : i32
    return %c0_i32, %c0_i32_0 : i32, i32
  }
  func.func @transform_5(%arg0: i32, %arg1: i32) -> (i32, i32, i32) {
    %c0_i32 = arith.constant 0 : i32
    %c0_i32_0 = arith.constant 0 : i32
    return %arg0, %c0_i32, %arg1 : i32, i32, i32
  }
}

</mosaic_0001>

<llo_original>
// kernel: tpu_custom_call.1
$region0: #{tpu_custom_call.1}
  #allocation0 [shape = 'u32[]', space=smem, size = 0x4, offset = 0x4, fixed_abs, tag = 'smem constant byte address 0x4 - core index']
  #allocation1 [shape = 'u32[144,128]{1,0:T(1,128)}', space=vmem, size = 0x12000, scoped, tag = 'internal scratch']
  %s0 = inlined_call_operand.vmem [shape: f32[2,4,256], index: 0, kind: input, shape index: {}]
  %s1 = inlined_call_operand.vmem [shape: bf16[8,4], index: 1, kind: input, shape index: {}]
  %s2 = inlined_call_operand.vmem [shape: f32[8,1], index: 2, kind: input, shape index: {}]
  %s3 = inlined_call_operand.vmem [shape: bf16[4,8], index: 3, kind: input, shape index: {}]
  %s4 = inlined_call_operand.vmem [shape: f32[4,1], index: 4, kind: input, shape index: {}]
  %s5 = inlined_call_operand.hbm [shape: f32[2,4,256], index: 5, kind: output, shape index: {}]
  %s6 = sld [smem:[#allocation0]]
  $region53: #{tpu_custom_call.1} parent=0
    _
  %s8 = ssub.s32 1, %s6
  %s9 = scalar_select 0, %s8, %s6
  $region1: #{tpu_custom_call.1} parent=0
    #allocation2 [shape = 'u8[4096]{0}', space=vmem, size = 0x1000, scoped, tag = 'output window, operand 0']
    #allocation3 [shape = 's32[2]{0}', space=sflag, size = 0x8, scoped, tag = 'scoped memory for tpu_custom_call.1']
    %10 = vsyncpa [#allocation3], 0
    %s11 = scalar_lea.sflag [#allocation3], 1
    %12 = vsyncpa %s11, 0
    loop: start=0, step=1, limit=6
    $region2: #{tpu_custom_call.1} parent=1 // loop_pre_header
      _
    $region3: #{tpu_custom_call.1} parent=1 // loop_header
      %s14 = sphi 0, %s18
      %p15 = scmp.ge.s32.totalorder %s14, 6
      %s21 = sphi 0, %s33
      %s22 = sphi 0, %s29
      %s23 = sphi 0, %s21
      %s24 = sphi 0, %s22
      %s25 = sphi 0, %s23
      %s26 = sphi 0, %s24
      %s38 = sphi 0, %s40
      %s41 = sphi 0, %s38
      %s42 = sphi 0, %s41
      %s58 = sphi 0, %s42
      %s62 = sphi 0, %s62
      %s64 = sphi 0, %s62
      %s65 = sphi 0, %s64
      %s79 = sphi 0, %s65
      %s83 = sphi 0, %s83
      %s85 = sphi 0, %s83
      %s86 = sphi 0, %s85
      %s100 = sphi 0, %s86
      %s104 = sphi 0, %s104
      %s106 = sphi 0, %s104
      %s107 = sphi 0, %s106
      %s121 = sphi 0, %s107
      %s125 = sphi 0, %s125
      %s127 = sphi 0, %s125
      %s128 = sphi 0, %s127
      %s142 = sphi 0, %s128
      %s150 = sphi 0, %s152
      %s153 = sphi 0, %s150
      %s154 = sphi 0, %s153
      %s170 = sphi 0, %s154
    $region4: #{tpu_custom_call.1} parent=1 // loop_header_branch
      %17 = sbr.rel (%p15) target = $region8
    $region5: #{tpu_custom_call.1} parent=1 // loop_body
      %s19 = ssub.s32 %s14, 1
      %s20 = ssub.s32 %s14, 2
      %s27 = sadd.s32 1, %s22
      %p28 = scmp.ge.s32.totalorder %s27, 2
      %s29 = scalar_select %p28, 0, %s27
      %s30 = sadd.s32 1, %s21
      %s31 = scalar_select %p28, %s30, %s21
      %p32 = scmp.ge.s32.totalorder %s31, 2
      %s33 = scalar_select %p32, 0, %s31
      %s34 = ssub.s32 %s21, %s33
      %s35 = ssub.s32 %s22, %s29
      %s36 = sor.u32 %s34, %s35
      %p37 = scmp.eq.s32.totalorder %s36, 0
      %s39 = sadd.s32 %s38, 1
      %s40 = scalar_select %p37, %s38, %s39
      %p43 = pneg %p37
      %p44 = scmp.eq.s32.totalorder %s14, 3
      %p45 = por %p43, %p44
      %p46 = scmp.ne.s32.totalorder %s38, %s41
      %p47 = scmp.eq.s32.totalorder %s14, 0
      %p48 = por %p46, %p47
      %p49 = scmp.ne.s32.totalorder %s38, %s41
      %p50 = scmp.eq.s32.totalorder %s19, 3
      %p51 = por %p49, %p50
      %p52 = scmp.ne.s32.totalorder %s41, %s42
      %p53 = scmp.eq.s32.totalorder %s19, 0
      %p54 = por %p52, %p53
      %p55 = scmp.ne.s32.totalorder %s41, %s42
      %p56 = scmp.eq.s32.totalorder %s20, 3
      %p57 = por %p55, %p56
      %p59 = scmp.ne.s32.totalorder %s42, %s58
      %p60 = scmp.eq.s32.totalorder %s20, 0
      %p61 = por %p59, %p60
      %s63 = sadd.s32 %s62, 1
      %p66 = scmp.eq.s32.totalorder %s14, 3
      %p67 = scmp.ne.s32.totalorder %s62, %s64
      %p68 = scmp.eq.s32.totalorder %s14, 0
      %p69 = por %p67, %p68
      %p70 = scmp.ne.s32.totalorder %s62, %s64
      %p71 = scmp.eq.s32.totalorder %s19, 3
      %p72 = por %p70, %p71
      %p73 = scmp.ne.s32.totalorder %s64, %s65
      %p74 = scmp.eq.s32.totalorder %s19, 0
      %p75 = por %p73, %p74
      %p76 = scmp.ne.s32.totalorder %s64, %s65
      %p77 = scmp.eq.s32.totalorder %s20, 3
      %p78 = por %p76, %p77
      %p80 = scmp.ne.s32.totalorder %s65, %s79
      %p81 = scmp.eq.s32.totalorder %s20, 0
      %p82 = por %p80, %p81
      %s84 = sadd.s32 %s83, 1
      %p87 = scmp.eq.s32.totalorder %s14, 3
      %p88 = scmp.ne.s32.totalorder %s83, %s85
      %p89 = scmp.eq.s32.totalorder %s14, 0
      %p90 = por %p88, %p89
      %p91 = scmp.ne.s32.totalorder %s83, %s85
      %p92 = scmp.eq.s32.totalorder %s19, 3
      %p93 = por %p91, %p92
      %p94 = scmp.ne.s32.totalorder %s85, %s86
      %p95 = scmp.eq.s32.totalorder %s19, 0
      %p96 = por %p94, %p95
      %p97 = scmp.ne.s32.totalorder %s85, %s86
      %p98 = scmp.eq.s32.totalorder %s20, 3
      %p99 = por %p97, %p98
      %p101 = scmp.ne.s32.totalorder %s86, %s100
      %p102 = scmp.eq.s32.totalorder %s20, 0
      %p103 = por %p101, %p102
      %s105 = sadd.s32 %s104, 1
      %p108 = scmp.eq.s32.totalorder %s14, 3
      %p109 = scmp.ne.s32.totalorder %s104, %s106
      %p110 = scmp.eq.s32.totalorder %s14, 0
      %p111 = por %p109, %p110
      %p112 = scmp.ne.s32.totalorder %s104, %s106
      %p113 = scmp.eq.s32.totalorder %s19, 3
      %p114 = por %p112, %p113
      %p115 = scmp.ne.s32.totalorder %s106, %s107
      %p116 = scmp.eq.s32.totalorder %s19, 0
      %p117 = por %p115, %p116
      %p118 = scmp.ne.s32.totalorder %s106, %s107
      %p119 = scmp.eq.s32.totalorder %s20, 3
      %p120 = por %p118, %p119
      %p122 = scmp.ne.s32.totalorder %s107, %s121
      %p123 = scmp.eq.s32.totalorder %s20, 0
      %p124 = por %p122, %p123
      %s126 = sadd.s32 %s125, 1
      %p129 = scmp.eq.s32.totalorder %s14, 3
      %p130 = scmp.ne.s32.totalorder %s125, %s127
      %p131 = scmp.eq.s32.totalorder %s14, 0
      %p132 = por %p130, %p131
      %p133 = scmp.ne.s32.totalorder %s125, %s127
      %p134 = scmp.eq.s32.totalorder %s19, 3
      %p135 = por %p133, %p134
      %p136 = scmp.ne.s32.totalorder %s127, %s128
      %p137 = scmp.eq.s32.totalorder %s19, 0
      %p138 = por %p136, %p137
      %p139 = scmp.ne.s32.totalorder %s127, %s128
      %p140 = scmp.eq.s32.totalorder %s20, 3
      %p141 = por %p139, %p140
      %p143 = scmp.ne.s32.totalorder %s128, %s142
      %p144 = scmp.eq.s32.totalorder %s20, 0
      %p145 = por %p143, %p144
      %s146 = ssub.s32 %s21, %s33
      %s147 = ssub.s32 %s22, %s29
      %s148 = sor.u32 %s146, %s147
      %p149 = scmp.eq.s32.totalorder %s148, 0
      %s151 = sadd.s32 %s150, 1
      %s152 = scalar_select %p149, %s150, %s151
      %p155 = pneg %p149
      %p156 = scmp.eq.s32.totalorder %s14, 3
      %p157 = por %p155, %p156
      %p158 = scmp.ne.s32.totalorder %s150, %s153
      %p159 = scmp.eq.s32.totalorder %s14, 0
      %p160 = por %p158, %p159
      %p161 = scmp.ne.s32.totalorder %s150, %s153
      %p162 = scmp.eq.s32.totalorder %s19, 3
      %p163 = por %p161, %p162
      %p164 = scmp.ne.s32.totalorder %s153, %s154
      %p165 = scmp.eq.s32.totalorder %s19, 0
      %p166 = por %p164, %p165
      %p167 = scmp.ne.s32.totalorder %s153, %s154
      %p168 = scmp.eq.s32.totalorder %s20, 3
      %p169 = por %p167, %p168
      %p171 = scmp.ne.s32.totalorder %s154, %s170
      %p172 = scmp.eq.s32.totalorder %s20, 0
      %p173 = por %p171, %p172
      %p174 = scmp.le.s32.totalorder 1, %s14
      %p175 = scmp.lt.s32.totalorder %s14, 5
      %p176 = pnand %p174, %p175
      %p177 = pneg %p176
      // Predicated region
      $region9: #{tpu_custom_call.1} parent=5 // pred_check
        _
      $region10: #{tpu_custom_call.1} parent=5 // pred_check_branch
        %179 = sbr.rel (%p176) target = $region12
      $region11: #{tpu_custom_call.1} parent=5 // pred_region
        %s180 = ssub.s32 %s14, 1
        // Predicated region
        $region13: #{tpu_custom_call.1} parent=11 // pred_check
          %p181 = pneg %p75
        $region14: #{tpu_custom_call.1} parent=11 // pred_check_branch
          %183 = sbr.rel (%p181) target = $region16
        $region15: #{tpu_custom_call.1} parent=11 // pred_region
          _
        $region16: #{tpu_custom_call.1} parent=11 // pred_fallthru
          _
        // Predicated region
        $region17: #{tpu_custom_call.1} parent=11 // pred_check
          %p184 = pneg %p96
        $region18: #{tpu_custom_call.1} parent=11 // pred_check_branch
          %186 = sbr.rel (%p184) target = $region20
        $region19: #{tpu_custom_call.1} parent=11 // pred_region
          _
        $region20: #{tpu_custom_call.1} parent=11 // pred_fallthru
          _
        // Predicated region
        $region21: #{tpu_custom_call.1} parent=11 // pred_check
          %p187 = pneg %p117
        $region22: #{tpu_custom_call.1} parent=11 // pred_check_branch
          %189 = sbr.rel (%p187) target = $region24
        $region23: #{tpu_custom_call.1} parent=11 // pred_region
          _
        $region24: #{tpu_custom_call.1} parent=11 // pred_fallthru
          _
        // Predicated region
        $region25: #{tpu_custom_call.1} parent=11 // pred_check
          %p190 = pneg %p138
        $region26: #{tpu_custom_call.1} parent=11 // pred_check_branch
          %192 = sbr.rel (%p190) target = $region28
        $region27: #{tpu_custom_call.1} parent=11 // pred_region
          _
        $region28: #{tpu_custom_call.1} parent=11 // pred_fallthru
          _
      $region12: #{tpu_custom_call.1} parent=5 // pred_fallthru
        _
      %p193 = scmp.lt.s32.totalorder %s14, 4
      // Predicated region
      $region29: #{tpu_custom_call.1} parent=5 // pred_check
        %p194 = pneg %p193
      $region30: #{tpu_custom_call.1} parent=5 // pred_check_branch
        %196 = sbr.rel (%p194) target = $region32
      $region31: #{tpu_custom_call.1} parent=5 // pred_region
        // Predicated region
        $region33: #{tpu_custom_call.1} parent=31 // pred_check
          %p197 = pneg %p48
        $region34: #{tpu_custom_call.1} parent=31 // pred_check_branch
          %199 = sbr.rel (%p197) target = $region36
        $region35: #{tpu_custom_call.1} parent=31 // pred_region
          %p200 = scmp.lt.s32.totalorder %s21, 1
          %s201 = scalar_select %p200, %s21, 1
          %p202 = scmp.lt.s32.totalorder %s22, 1
          %s203 = scalar_select %p202, %s22, 1
          %s204 = smul.addr %s201, 2
          %s205 = sadd.s32 %s203, %s204
          %s206 = smul.addr %s205, 4
          %s207 = scalar_lea.vmem %s0, %s206
        $region36: #{tpu_custom_call.1} parent=31 // pred_fallthru
          _
      $region32: #{tpu_custom_call.1} parent=5 // pred_fallthru
        _
      %p208 = scmp.le.s32.totalorder 1, %s14
      %p209 = scmp.lt.s32.totalorder %s14, 5
      %p210 = pnand %p208, %p209
      %p211 = pneg %p210
      // Predicated region
      $region37: #{tpu_custom_call.1} parent=5 // pred_check
        _
      $region38: #{tpu_custom_call.1} parent=5 // pred_check_branch
        %213 = sbr.rel (%p210) target = $region40
      $region39: #{tpu_custom_call.1} parent=5 // pred_region
        %s214 = ssub.s32 %s14, 1
        %p215 = scmp.lt.s32.totalorder %s23, 1
        %s216 = scalar_select %p215, %s23, 1
        %p217 = scmp.lt.s32.totalorder %s24, 1
        %s218 = scalar_select %p217, %s24, 1
        %s219 = smul.addr %s216, 2
        %s220 = sadd.s32 %s218, %s219
        %s221 = smul.addr %s220, 4
        %s222 = scalar_lea.vmem %s0, %s221
        %p223 = pneg %p54
        %p224 = pneg %p51
        %p225 = pneg %p75
        %p226 = pneg %p72
        %p227 = pneg %p96
        %p228 = pneg %p93
        %p229 = pneg %p117
        %p230 = pneg %p114
        %p231 = pneg %p138
        %p232 = pneg %p135
        %p233 = pneg %p166
        %p234 = pneg %p163
        %s235 = sand.u32 %s153, 1
        %s236 = scalar_lea.sflag [#allocation3], %s235
        %s237 = sand.u32 %s153, 1
        %s238 = smul.addr %s237, 4
        %s239 = scalar_lea.vmem [#allocation2], %s238
        %p240 = scmp.lt.s32.totalorder %s23, 1
        %s241 = scalar_select %p240, %s23, 1
        %p242 = scmp.lt.s32.totalorder %s24, 1
        %s243 = scalar_select %p242, %s24, 1
        %s244 = smul.addr %s241, 2
        %s245 = sadd.s32 %s243, %s244
        %s246 = smul.addr %s245, 4
        %s247 = scalar_lea.vmem %s0, %s246
        %v249 = vld [vmem:[%s247] sm:$0xf]
        %vm250 = vcmask 1043456
        %v251 = vsel %vm250, %v249, 0.0
        %v252 = vrot.slane %v251, 4
        %v253 = vadd.f32 %v251, %v252
        %v254 = vrot.slane %v253, 2
        %v255 = vadd.f32 %v253, %v254
        %v256 = vrot.slane %v255, 1
        %v257 = vadd.f32 %v255, %v256
        %v258 = vmul.f32 %v257, 0.25
        %v259 = vmul.f32 %v249, %v249
        %v260 = vsel %vm250, %v259, 0.0
        %v261 = vrot.slane %v260, 4
        %v262 = vadd.f32 %v260, %v261
        %v263 = vrot.slane %v262, 2
        %v264 = vadd.f32 %v262, %v263
        %v265 = vrot.slane %v264, 1
        %v266 = vadd.f32 %v264, %v265
        %v267 = vmul.f32 %v266, 0.25
        %v268 = vmul.f32 %v258, %v258
        %v269 = vsub.f32 %v267, %v268
        %v270 = vmax.f32 %v269, 0.0
        %v271 = vsub.f32 %v249, %v258
        %v272 = vadd.f32 %v270, 1e-06
        %v273 = vrsqrt.pop %v272
        %v274 = vmul.f32 %v271, %v273
        %v275 = vld [vmem:[%s1] sm:$0xf]
        %v276 = vpack.c.bf16 %v274, %v274
        %v277 = vld [vmem:[%s2] sm:$0xff]
        %279 = vset.pattern.permute.xlu0 0
        %280 = vperm.xlu0 %279, %v277
        %v281 = vpop.permute.xlu0 %280
        %vm283 = vcmask 31744
        %v285 = vsel %vm283, %v275, 0
        %vm287 = vcmask 1041408
        %v289 = vsel %vm287, %v276, 0
        %291 = vmatprep.subr.bf16.mxu0 0
        %292 = vmatpush1.bf16.msra.mxu0 %v289
        %293 = vmatprep.subr.bf16.mxu0 0
        %294 = vmatpush1.bf16.msra.mxu0 0
        %295 = vmatprep.subr.bf16.mxu0 0
        %296 = vmatpush1.bf16.msra.mxu0 0
        %297 = vmatprep.subr.bf16.mxu0 0
        %298 = vmatpush1.bf16.msra.mxu0 0
        %299 = vmatprep.subr.bf16.mxu0 0
        %300 = vmatpush1.bf16.msra.mxu0 0
        %301 = vmatprep.subr.bf16.mxu0 0
        %302 = vmatpush1.bf16.msra.mxu0 0
        %303 = vmatprep.subr.bf16.mxu0 0
        %304 = vmatpush1.bf16.msra.mxu0 0
        %305 = vmatprep.subr.bf16.mxu0 0
        %306 = vmatpush1.bf16.msra.mxu0 0
        %307 = vmatprep.subr.bf16.mxu0 0
        %308 = vmatpush1.bf16.msra.mxu0 0
        %309 = vmatprep.subr.bf16.mxu0 0
        %310 = vmatpush1.bf16.msra.mxu0 0
        %311 = vmatprep.subr.bf16.mxu0 0
        %312 = vmatpush1.bf16.msra.mxu0 0
        %313 = vmatprep.subr.bf16.mxu0 0
        %314 = vmatpush1.bf16.msra.mxu0 0
        %315 = vmatprep.subr.bf16.mxu0 0
        %316 = vmatpush1.bf16.msra.mxu0 0
        %317 = vmatprep.subr.bf16.mxu0 0
        %318 = vmatpush1.bf16.msra.mxu0 0
        %319 = vmatprep.subr.bf16.mxu0 0
        %320 = vmatpush1.bf16.msra.mxu0 0
        %321 = vmatprep.subr.bf16.mxu0 0
        %322 = vmatpush1.bf16.msra.mxu0 0
        %323 = vmatprep.mubr.bf16.mxu0 0
        %324 = vmatmul.mubr.bf16.gmra.mrb[0].mxu0 %v285
        %v325 = vpop.f32.mrb[0].mxu0
        %v326 = vadd.f32 %v281, %v325
        %v327 = vpop.f32.mrb[0].mxu0
        %v328 = vpop.f32.mrb[0].mxu0
        %v329 = vpop.f32.mrb[0].mxu0
        %330 = vdwg.mxu0
        %v331 = vmul.f32 %v326, 0.5
        %v332 = vmul.f32 %v326, 0.70710677
        %v333 = verf.f32.pop %v332
        %v334 = vadd.f32 %v333, 1.0
        %v335 = vmul.f32 %v331, %v334
        %v336 = vld [vmem:[%s3] sm:$0x3]
        %v337 = vpack.c.bf16 %v335, %v335
        %v338 = vld [vmem:[%s4] sm:$0xf]
        %340 = vset.pattern.permute.xlu0 0
        %341 = vperm.xlu0 %340, %v338
        %v342 = vpop.permute.xlu0 %341
        %vm344 = vcmask 64512
        %v346 = vsel %vm344, %v336, 0
        %v349 = vsel %vm250, %v337, 0
        %351 = vmatprep.subr.bf16.mxu0 0
        %352 = vmatpush1.bf16.msra.mxu0 %v349
        %353 = vmatprep.subr.bf16.mxu0 0
        %354 = vmatpush1.bf16.msra.mxu0 0
        %355 = vmatprep.subr.bf16.mxu0 0
        %356 = vmatpush1.bf16.msra.mxu0 0
        %357 = vmatprep.subr.bf16.mxu0 0
        %358 = vmatpush1.bf16.msra.mxu0 0
        %359 = vmatprep.subr.bf16.mxu0 0
        %360 = vmatpush1.bf16.msra.mxu0 0
        %361 = vmatprep.subr.bf16.mxu0 0
        %362 = vmatpush1.bf16.msra.mxu0 0
        %363 = vmatprep.subr.bf16.mxu0 0
        %364 = vmatpush1.bf16.msra.mxu0 0
        %365 = vmatprep.subr.bf16.mxu0 0
        %366 = vmatpush1.bf16.msra.mxu0 0
        %367 = vmatprep.subr.bf16.mxu0 0
        %368 = vmatpush1.bf16.msra.mxu0 0
        %369 = vmatprep.subr.bf16.mxu0 0
        %370 = vmatpush1.bf16.msra.mxu0 0
        %371 = vmatprep.subr.bf16.mxu0 0
        %372 = vmatpush1.bf16.msra.mxu0 0
        %373 = vmatprep.subr.bf16.mxu0 0
        %374 = vmatpush1.bf16.msra.mxu0 0
        %375 = vmatprep.subr.bf16.mxu0 0
        %376 = vmatpush1.bf16.msra.mxu0 0
        %377 = vmatprep.subr.bf16.mxu0 0
        %378 = vmatpush1.bf16.msra.mxu0 0
        %379 = vmatprep.subr.bf16.mxu0 0
        %380 = vmatpush1.bf16.msra.mxu0 0
        %381 = vmatprep.subr.bf16.mxu0 0
        %382 = vmatpush1.bf16.msra.mxu0 0
        %383 = vmatprep.mubr.bf16.mxu0 0
        %384 = vmatmul.mubr.bf16.gmra.mrb[0].mxu0 %v346
        %v385 = vpop.f32.mrb[0].mxu0
        %v386 = vadd.f32 %v342, %v385
        %v387 = vpop.f32.mrb[0].mxu0
        %v388 = vpop.f32.mrb[0].mxu0
        %v389 = vpop.f32.mrb[0].mxu0
        %390 = vdwg.mxu0
        %v391 = vadd.f32 %v386, %v249
        %392 = vst [vmem:[%s239] sm:$0xf] %v391
        %s393 = sand.u32 %s153, 1
        %s394 = scalar_lea.sflag [#allocation3], %s393
        %s395 = sand.u32 %s153, 1
        %s396 = smul.addr %s395, 4
        %s397 = scalar_lea.vmem [#allocation2], %s396
        // Predicated region
        $region41: #{tpu_custom_call.1} parent=39 // pred_check
          %p398 = pneg %p163
        $region42: #{tpu_custom_call.1} parent=39 // pred_check_branch
          %400 = sbr.rel (%p398) target = $region44
        $region43: #{tpu_custom_call.1} parent=39 // pred_region
          %s402 = ssub.s32 64, 64
          %403 = vsyncadd %s394, %s402
          %s404 = smul.addr %s23, 2
          %s405 = sadd.s32 %s24, %s404
          %s406 = smul.addr %s405, 64
          %s407 = scalar_lea.hbm %s5, %s406
          %s409 = sshll.u32 %s397, 4
          %s410 = int_to_ptr.vmem [resolvable:$true] %s409
          %412 = dma.vmem_to_hbm [thread:$0]  %s410, 64, %s407, %s394
        $region44: #{tpu_custom_call.1} parent=39 // pred_fallthru
          _
      $region40: #{tpu_custom_call.1} parent=5 // pred_fallthru
        _
      %p413 = scmp.le.s32.totalorder 2, %s14
      // Predicated region
      $region45: #{tpu_custom_call.1} parent=5 // pred_check
        %p414 = pneg %p413
      $region46: #{tpu_custom_call.1} parent=5 // pred_check_branch
        %416 = sbr.rel (%p414) target = $region48
      $region47: #{tpu_custom_call.1} parent=5 // pred_region
        %s417 = ssub.s32 %s14, 2
        // Predicated region
        $region49: #{tpu_custom_call.1} parent=47 // pred_check
          %p418 = pneg %p169
        $region50: #{tpu_custom_call.1} parent=47 // pred_check_branch
          %420 = sbr.rel (%p418) target = $region52
        $region51: #{tpu_custom_call.1} parent=47 // pred_region
          %s421 = sand.u32 %s154, 1
          %s422 = scalar_lea.sflag [#allocation3], %s421
          %s423 = sand.u32 %s154, 1
          %s424 = smul.addr %s423, 4
          %s425 = scalar_lea.vmem [#allocation2], %s424
          %426 = dma.done %s422, 64
        $region52: #{tpu_custom_call.1} parent=47 // pred_fallthru
          _
      $region48: #{tpu_custom_call.1} parent=5 // pred_fallthru
        _
    $region6: #{tpu_custom_call.1} parent=1 // loop_footer
      %s18 = sadd.s32 1, %s14
    $region7: #{tpu_custom_call.1} parent=1 // loop_footer_branch
      %13 = sbr.rel target = $region3
    $region8: #{tpu_custom_call.1} parent=1 // loop_exit
      _
    %427 = vsyncpa [#allocation3], 1
    %s428 = scalar_lea.sflag [#allocation3], 1
    %429 = vsyncpa %s428, 1

</llo_original>
